<compile_context>
chip_gen: v5e
topology: v5e:2x2
jax: 0.10.0
libtpu: 0.0.40
codegen_flags: <defaults>
</compile_context>

<pallas_src>
import jax
import jax.numpy as jnp
import numpy as np
from jax.experimental import pallas as pl
from jax.experimental.pallas import tpu as pltpu

# ---- small, deterministic synthetic sizes (BERT hidden=32 stand-in, concept=32) ----
H = 32                      # "BERT" hidden size
C = 32                      # concept embedding dim (stand-in for 300)
D = 2 * H + C               # classifier input width = 96
D2 = D // 2                 # 48
D3 = D // 4                 # 24
NUM_LABELS = 4
NUM_TYPES = 3
VOCAB = 50
SEQ = 8
B = 16                      # batch
TB = B                      # batch tile == full batch -> grid=(1,) (overhead-bound kernel)
POOL_W = (NUM_TYPES + 1) * H   # 128: fused [shared | priv0 | priv1 | priv2] width
LPAD = 128                  # lane-dense padded width for all classifier layers / output
LN_EPS = 1e-5
NEG_INF = -1e30


def shared_private_kernel(
    xrows_ref,      # [4, TB, LPAD] f32 : 0=xpool, 1=routing mask, 2=routed pooler bias, 3=concept(pre-placed)
    smalls_ref,     # [8, LPAD] f32     : 0=gamma, 1=beta, 2=b1, 3=b2, 4=b3(-1e30 pad), 5=LN valid mask
    w_ref,          # [4, LPAD, LPAD] bf16 : 0=fused pooler, 1=W1, 2=W2, 3=W3 (all zero-padded)
    out_ref,        # [TB, LPAD] f32 softmax probs (real labels in lanes 0..NUM_LABELS-1)
):
    f32 = jnp.float32
    bf16 = jnp.bfloat16

    xpool = xrows_ref[0]            # [TB, 128]  [xs | xp0 | xp1 | xp2]
    sel   = xrows_ref[1]            # [TB, 128]  1 on lanes 0..31 and on selected private block
    biasr = xrows_ref[2]            # [TB, 128]  [b_ps | b_pp[hidx] | 0 | 0]
    conc  = xrows_ref[3]            # [TB, 128]  [0 | 0 | concept | 0]

    gamma = smalls_ref[0:1, :]
    beta  = smalls_ref[1:2, :]
    b1    = smalls_ref[2:3, :]
    b2    = smalls_ref[3:4, :]
    b3    = smalls_ref[4:5, :]
    valid = smalls_ref[5:6, :]      # 1.0 on lanes 0..D-1, else 0.0

    # --- fused shared + routed private pooler: ONE 128-wide MXU dot (dropout == identity) ---
    # Routing is pre-matmul: non-selected private input blocks are zeroed by `sel`, and the
    # fused weight stacks all three private pooler weights into output lanes 32..63, so the
    # result lanes are [shared | selected-private | 0 | 0] directly.
    pre = jnp.dot((xpool * sel).astype(bf16), w_ref[0],
                  preferred_element_type=f32) + biasr
    pooled = jnp.tanh(pre)                                  # pad lanes stay exactly 0

    # --- concat [shared | priv | concept] as a plain 128-lane add ---
    cat = pooled + conc                                     # [TB, 128], lanes 96..127 == 0

    # --- LayerNorm over the D=96 valid lanes (128-lane dense with validity mask) ---
    mu = jnp.sum(cat, axis=1, keepdims=True) * (1.0 / D)    # pad lanes are 0 -> exact mean
    xc = (cat - mu) * valid                                 # zero the pad lanes post-centering
    var = jnp.sum(xc * xc, axis=1, keepdims=True) * (1.0 / D)
    ln = xc * jax.lax.rsqrt(var + LN_EPS) * gamma + beta    # gamma/beta pad == 0 -> ln pad == 0

    # --- classifier MLP: lane-dense padded matmuls (bf16 operands, f32 accumulate) ---
    h1 = jnp.maximum(jnp.dot(ln.astype(bf16), w_ref[1], preferred_element_type=f32) + b1, 0.0)
    h2 = jnp.maximum(jnp.dot(h1.astype(bf16), w_ref[2], preferred_element_type=f32) + b2, 0.0)
    logits = jnp.dot(h2.astype(bf16), w_ref[3], preferred_element_type=f32) + b3
    # padded logit lanes == -1e30 exactly (w3 pad cols == 0, h2 pad == 0) -> exp == 0

    # --- Softmax(dim=1), reciprocal on the EUP ---
    m = jnp.max(logits, axis=1, keepdims=True)
    e = jnp.exp(logits - m)
    inv = pl.reciprocal(jnp.sum(e, axis=1, keepdims=True), approx=True)
    out_ref[...] = e * inv


# ----------------------- wrapper -----------------------

def _prep_fused_params(params):
    """Pack all replicated operands into two blocks: weights [4,128,128] bf16, smalls [8,128] f32.

    Invariants required by the kernel's -1e30 softmax-pad trick and the LN mask:
      * w1/w2/w3 pad rows/cols are exactly 0; b1/b2 pad lanes exactly 0 (so h1/h2 pad lanes == 0).
      * b3 pad lanes are exactly -1e30; w3 pad cols exactly 0.
      * gamma/beta pad lanes exactly 0; LN valid mask is 1 on lanes < D, 0 elsewhere.
    """
    f32, bf16 = jnp.float32, jnp.bfloat16

    # fused pooler weight: rows 0..31 -> W_shared into cols 0..31;
    # rows (t+1)*32..(t+2)*32 -> W_private[t] into cols 32..63 (routing selects one via input mask)
    wf = jnp.zeros((POOL_W, LPAD), f32)
    wf = wf.at[0:H, 0:H].set(params["wps"])
    for t in range(NUM_TYPES):
        wf = wf.at[(t + 1) * H:(t + 2) * H, H:2 * H].set(params["wpp"][t])

    w1 = jnp.zeros((LPAD, LPAD), f32).at[:D, :D2].set(params["w1"])
    w2 = jnp.zeros((LPAD, LPAD), f32).at[:D2, :D3].set(params["w2"])
    w3 = jnp.zeros((LPAD, LPAD), f32).at[:D3, :NUM_LABELS].set(params["w3"])
    weights = jnp.stack([wf, w1, w2, w3], axis=0).astype(bf16)      # [4,128,128] — one DMA

    smalls = jnp.zeros((8, LPAD), f32)
    smalls = smalls.at[0, :D].set(params["gamma"][0])
    smalls = smalls.at[1, :D].set(params["beta"][0])
    smalls = smalls.at[2, :D2].set(params["b1"][0])
    smalls = smalls.at[3, :D3].set(params["b2"][0])
    smalls = smalls.at[4, :].set(NEG_INF)
    smalls = smalls.at[4, :NUM_LABELS].set(params["b3"][0])
    smalls = smalls.at[5, :D].set(1.0)                              # LN validity mask

    return weights, smalls


def run_pallas(humor_type_idx, xs, xp, params, concept):
    f32 = jnp.float32
    weights, smalls = _prep_fused_params(params)

    nb = xs.shape[0]
    hidx = humor_type_idx.astype(jnp.int32)

    # Routing lane mask: ones on shared lanes 0..31 and on the selected private 32-lane block.
    onehot = (hidx[:, None] == jnp.arange(NUM_TYPES)[None, :]).astype(f32)       # [B, 3]
    sel = jnp.concatenate([jnp.ones((nb, H), f32), jnp.repeat(onehot, H, axis=1)], axis=1)

    # Per-row routed pooler bias: [b_shared | b_private[hidx] | 0 | 0].
    bpriv = jnp.take(params["bpp"][:, 0, :], hidx, axis=0)                        # [B, H]
    biasr = jnp.concatenate([jnp.broadcast_to(params["bps"], (nb, H)),
                             bpriv, jnp.zeros((nb, LPAD - 2 * H), f32)], axis=1)

    # Concept pre-placed into lanes 64..95 (concat becomes an elementwise add in-kernel).
    conc128 = jnp.concatenate([jnp.zeros((nb, 2 * H), f32), concept,
                               jnp.zeros((nb, LPAD - 2 * H - C), f32)], axis=1)

    xpool = jnp.concatenate([xs] + [xp[t] for t in range(NUM_TYPES)], axis=1)     # [B, 128]

    xrows = jnp.stack([xpool, sel, biasr, conc128], axis=0)                       # [4, B, 128]

    tb = min(TB, nb)
    grid = (nb // tb,)                                                            # (1,) here

    out_padded = pl.pallas_call(
        shared_private_kernel,
        out_shape=jax.ShapeDtypeStruct((nb, LPAD), jnp.float32),
        grid=grid,
        in_specs=[
            pl.BlockSpec((4, tb, LPAD), lambda i: (0, i, 0)),     # batch rows (all 4 stacked -> 1 DMA)
            pl.BlockSpec((8, LPAD), lambda i: (0, 0)),            # packed small params
            pl.BlockSpec((4, LPAD, LPAD), lambda i: (0, 0, 0)),   # packed weights
        ],
        out_specs=pl.BlockSpec((tb, LPAD), lambda i: (i, 0)),
        # Single grid step at this batch size: no cross-TC sharding (duplicating weights into
        # both v7x TensorCores would cost more than it saves at B=16).
        compiler_params=pltpu.CompilerParams(dimension_semantics=("arbitrary",)),
    )(xrows, smalls, weights)

    return out_padded[:, :NUM_LABELS]      # lane-dense kernel output; slice is layout plumbing


# ----------------------- glue (plain JAX) -----------------------

def masked_mean_embed(emb_table, input_ids, attention_mask):
    """Stand-in for a BERT encoder: masked mean of token embeddings."""
    tok = emb_table[input_ids]                              # [B, L, H]
    m = attention_mask[..., None].astype(jnp.float32)       # [B, L, 1]
    return (tok * m).sum(axis=1) / jnp.maximum(m.sum(axis=1), 1.0)


def reference_forward(humor_type_idx, xs, xp, params, concept):
    """Pure-JAX f32 reference mirroring the PyTorch forward semantics."""
    shared = jnp.tanh(xs @ params["wps"] + params["bps"])
    priv = jnp.zeros_like(shared)
    for t in range(NUM_TYPES):
        p_t = jnp.tanh(xp[t] @ params["wpp"][t] + params["bpp"][t])
        mask_t = (humor_type_idx[:, None] == t).astype(jnp.float32)
        priv = priv + mask_t * p_t
    combined = jnp.concatenate([shared, priv, concept], axis=1)
    mu = combined.mean(axis=1, keepdims=True)
    var = combined.var(axis=1, keepdims=True)
    ln = (combined - mu) / jnp.sqrt(var + LN_EPS) * params["gamma"] + params["beta"]
    h1 = jax.nn.relu(ln @ params["w1"] + params["b1"])
    h2 = jax.nn.relu(h1 @ params["w2"] + params["b2"])
    logits = h2 @ params["w3"] + params["b3"]
    return jax.nn.softmax(logits, axis=1)


def init_params(key):
    ks = jax.random.split(key, 16)
    s = 0.1
    return {
        "emb_shared": s * jax.random.normal(ks[0], (VOCAB, H), jnp.float32),
        "emb_priv": s * jax.random.normal(ks[1], (NUM_TYPES, VOCAB, H), jnp.float32),
        "wps": s * jax.random.normal(ks[2], (H, H), jnp.float32),
        "bps": s * jax.random.normal(ks[3], (1, H), jnp.float32),
        "wpp": s * jax.random.normal(ks[4], (NUM_TYPES, H, H), jnp.float32),
        "bpp": s * jax.random.normal(ks[5], (NUM_TYPES, 1, H), jnp.float32),
        "gamma": 1.0 + s * jax.random.normal(ks[6], (1, D), jnp.float32),
        "beta": s * jax.random.normal(ks[7], (1, D), jnp.float32),
        "w1": s * jax.random.normal(ks[8], (D, D2), jnp.float32),
        "b1": s * jax.random.normal(ks[9], (1, D2), jnp.float32),
        "w2": s * jax.random.normal(ks[10], (D2, D3), jnp.float32),
        "b2": s * jax.random.normal(ks[11], (1, D3), jnp.float32),
        "w3": s * jax.random.normal(ks[12], (D3, NUM_LABELS), jnp.float32),
        "b3": s * jax.random.normal(ks[13], (1, NUM_LABELS), jnp.float32),
    }


if __name__ == "__main__":
    key = jax.random.PRNGKey(0)
    kp, k_ids, k_mask, k_type, k_concept = jax.random.split(key, 5)
    params = init_params(kp)

    # deterministic example inputs (mirroring the PyTorch forward signature)
    input_ids = jax.random.randint(k_ids, (B, SEQ), 0, VOCAB, dtype=jnp.int32)
    attention_mask = (jax.random.uniform(k_mask, (B, SEQ)) > 0.2).astype(jnp.int32)
    attention_mask = attention_mask.at[:, 0].set(1)          # keep at least one token
    token_type_ids = jnp.zeros((B, SEQ), jnp.int32)          # unused by the stand-in encoder
    humor_type_idx = jax.random.randint(k_type, (B,), 0, NUM_TYPES, dtype=jnp.int32)
    concept_embeddings = jax.random.normal(k_concept, (B, C), jnp.float32)

    # encoder stand-ins (glue): shared features + per-type private features
    xs = masked_mean_embed(params["emb_shared"], input_ids, attention_mask)          # [B, H]
    xp = jnp.stack(
        [masked_mean_embed(params["emb_priv"][t], input_ids, attention_mask)
         for t in range(NUM_TYPES)], axis=0)                                          # [T, B, H]

    out = run_pallas(humor_type_idx, xs, xp, params, concept_embeddings)
    out = jax.block_until_ready(out)

    ref = reference_forward(humor_type_idx, xs, xp, params, concept_embeddings)
    # tolerance loosened vs pure-f32: matmul operands are bf16 (MXU-native) with f32 accumulation
    np.testing.assert_allclose(np.asarray(out), np.asarray(ref), rtol=2e-2, atol=2e-2)
    assert out.shape == (B, NUM_LABELS)
    assert np.all(np.isfinite(np.asarray(out)))

    print("KERNEL_OK")
</pallas_src>

<mosaic_0001>
module attributes {stable_mosaic.version = 11 : i64} {
  func.func @shared_private_kernel(%arg0: i32, %arg1: memref<4x16x128xf32, #tpu.memory_space<vmem>>, %arg2: memref<8x128xf32, #tpu.memory_space<vmem>>, %arg3: memref<4x128x128xbf16, #tpu.memory_space<vmem>>, %arg4: memref<16x128xf32, #tpu.memory_space<vmem>>) attributes {dimension_semantics = [#tpu.dimension_semantics<arbitrary>], iteration_bounds = array<i64: 1>, scalar_prefetch = 0 : i64, scratch_operands = 0 : i64, tpu.core_type = #tpu.core_type<tc>, window_params = [{transform_indices = @transform_0, window_bounds = array<i64: 4, 16, 128>}, {pipeline_mode = #tpu.pipeline_mode<synchronous>, transform_indices = @transform_1, window_bounds = array<i64: 8, 128>}, {pipeline_mode = #tpu.pipeline_mode<synchronous>, transform_indices = @transform_2, window_bounds = array<i64: 4, 128, 128>}, {transform_indices = @transform_3, window_bounds = array<i64: 16, 128>}]} {
    %c0 = arith.constant 0 : index
    %c0_0 = arith.constant 0 : index
    %c0_1 = arith.constant 0 : index
    %0 = vector.load %arg1[%c0, %c0_0, %c0_1] : memref<4x16x128xf32, #tpu.memory_space<vmem>>, vector<1x16x128xf32>
    %1 = vector.shape_cast %0 : vector<1x16x128xf32> to vector<16x128xf32>
    %c1 = arith.constant 1 : index
    %c0_2 = arith.constant 0 : index
    %c0_3 = arith.constant 0 : index
    %2 = vector.load %arg1[%c1, %c0_2, %c0_3] : memref<4x16x128xf32, #tpu.memory_space<vmem>>, vector<1x16x128xf32>
    %3 = vector.shape_cast %2 : vector<1x16x128xf32> to vector<16x128xf32>
    %c2 = arith.constant 2 : index
    %c0_4 = arith.constant 0 : index
    %c0_5 = arith.constant 0 : index
    %4 = vector.load %arg1[%c2, %c0_4, %c0_5] : memref<4x16x128xf32, #tpu.memory_space<vmem>>, vector<1x16x128xf32>
    %5 = vector.shape_cast %4 : vector<1x16x128xf32> to vector<16x128xf32>
    %c3 = arith.constant 3 : index
    %c0_6 = arith.constant 0 : index
    %c0_7 = arith.constant 0 : index
    %6 = vector.load %arg1[%c3, %c0_6, %c0_7] : memref<4x16x128xf32, #tpu.memory_space<vmem>>, vector<1x16x128xf32>
    %7 = vector.shape_cast %6 : vector<1x16x128xf32> to vector<16x128xf32>
    %c0_8 = arith.constant 0 : index
    %c0_9 = arith.constant 0 : index
    %8 = vector.load %arg2[%c0_8, %c0_9] : memref<8x128xf32, #tpu.memory_space<vmem>>, vector<1x128xf32>
    %c1_10 = arith.constant 1 : index
    %c0_11 = arith.constant 0 : index
    %9 = vector.load %arg2[%c1_10, %c0_11] : memref<8x128xf32, #tpu.memory_space<vmem>>, vector<1x128xf32>
    %c2_12 = arith.constant 2 : index
    %c0_13 = arith.constant 0 : index
    %10 = vector.load %arg2[%c2_12, %c0_13] : memref<8x128xf32, #tpu.memory_space<vmem>>, vector<1x128xf32>
    %c3_14 = arith.constant 3 : index
    %c0_15 = arith.constant 0 : index
    %11 = vector.load %arg2[%c3_14, %c0_15] : memref<8x128xf32, #tpu.memory_space<vmem>>, vector<1x128xf32>
    %c4 = arith.constant 4 : index
    %c0_16 = arith.constant 0 : index
    %12 = vector.load %arg2[%c4, %c0_16] : memref<8x128xf32, #tpu.memory_space<vmem>>, vector<1x128xf32>
    %c5 = arith.constant 5 : index
    %c0_17 = arith.constant 0 : index
    %13 = vector.load %arg2[%c5, %c0_17] : memref<8x128xf32, #tpu.memory_space<vmem>>, vector<1x128xf32>
    %14 = arith.mulf %1, %3 : vector<16x128xf32>
    %15 = arith.truncf %14 : vector<16x128xf32> to vector<16x128xbf16>
    %c0_18 = arith.constant 0 : index
    %c0_19 = arith.constant 0 : index
    %c0_20 = arith.constant 0 : index
    %16 = vector.load %arg3[%c0_18, %c0_19, %c0_20] : memref<4x128x128xbf16, #tpu.memory_space<vmem>>, vector<1x128x128xbf16>
    %17 = vector.shape_cast %16 : vector<1x128x128xbf16> to vector<128x128xbf16>
    %cst = arith.constant dense<0.000000e+00> : vector<16x128xf32>
    %18 = tpu.matmul %15, %17, %cst {dimension_numbers = #tpu.dot_dimension_numbers<[1], [0], [0], [1], [0, 0, 1, 1], [], []>} : vector<16x128xbf16>, vector<128x128xbf16>, vector<16x128xf32> -> vector<16x128xf32>
    %19 = arith.addf %18, %5 : vector<16x128xf32>
    %20 = math.tanh %19 : vector<16x128xf32>
    %21 = arith.addf %20, %7 : vector<16x128xf32>
    %cst_21 = arith.constant dense<0.000000e+00> : vector<16xf32>
    %22 = vector.multi_reduction <add>, %21, %cst_21 [1] : vector<16x128xf32> to vector<16xf32>
    %23 = vector.shape_cast %22 : vector<16xf32> to vector<16x1xf32>
    %cst_22 = arith.constant 0.010416667 : f32
    %24 = vector.broadcast %cst_22 : f32 to vector<16x1xf32>
    %25 = arith.mulf %23, %24 : vector<16x1xf32>
    %26 = vector.broadcast %25 : vector<16x1xf32> to vector<16x128xf32>
    %27 = arith.subf %21, %26 : vector<16x128xf32>
    %28 = vector.broadcast %13 : vector<1x128xf32> to vector<16x128xf32>
    %29 = arith.mulf %27, %28 : vector<16x128xf32>
    %30 = arith.mulf %29, %29 : vector<16x128xf32>
    %cst_23 = arith.constant dense<0.000000e+00> : vector<16xf32>
    %31 = vector.multi_reduction <add>, %30, %cst_23 [1] : vector<16x128xf32> to vector<16xf32>
    %32 = vector.shape_cast %31 : vector<16xf32> to vector<16x1xf32>
    %cst_24 = arith.constant 0.010416667 : f32
    %33 = vector.broadcast %cst_24 : f32 to vector<16x1xf32>
    %34 = arith.mulf %32, %33 : vector<16x1xf32>
    %cst_25 = arith.constant 9.99999974E-6 : f32
    %35 = vector.broadcast %cst_25 : f32 to vector<16x1xf32>
    %36 = arith.addf %34, %35 : vector<16x1xf32>
    %37 = math.rsqrt %36 : vector<16x1xf32>
    %38 = vector.broadcast %37 : vector<16x1xf32> to vector<16x128xf32>
    %39 = arith.mulf %29, %38 : vector<16x128xf32>
    %40 = vector.broadcast %8 : vector<1x128xf32> to vector<16x128xf32>
    %41 = arith.mulf %39, %40 : vector<16x128xf32>
    %42 = vector.broadcast %9 : vector<1x128xf32> to vector<16x128xf32>
    %43 = arith.addf %41, %42 : vector<16x128xf32>
    %44 = arith.truncf %43 : vector<16x128xf32> to vector<16x128xbf16>
    %c1_26 = arith.constant 1 : index
    %c0_27 = arith.constant 0 : index
    %c0_28 = arith.constant 0 : index
    %45 = vector.load %arg3[%c1_26, %c0_27, %c0_28] : memref<4x128x128xbf16, #tpu.memory_space<vmem>>, vector<1x128x128xbf16>
    %46 = vector.shape_cast %45 : vector<1x128x128xbf16> to vector<128x128xbf16>
    %cst_29 = arith.constant dense<0.000000e+00> : vector<16x128xf32>
    %47 = tpu.matmul %44, %46, %cst_29 {dimension_numbers = #tpu.dot_dimension_numbers<[1], [0], [0], [1], [0, 0, 1, 1], [], []>} : vector<16x128xbf16>, vector<128x128xbf16>, vector<16x128xf32> -> vector<16x128xf32>
    %48 = vector.broadcast %10 : vector<1x128xf32> to vector<16x128xf32>
    %49 = arith.addf %47, %48 : vector<16x128xf32>
    %cst_30 = arith.constant 0.000000e+00 : f32
    %50 = vector.broadcast %cst_30 : f32 to vector<16x128xf32>
    %51 = arith.maximumf %49, %50 : vector<16x128xf32>
    %52 = arith.truncf %51 : vector<16x128xf32> to vector<16x128xbf16>
    %c2_31 = arith.constant 2 : index
    %c0_32 = arith.constant 0 : index
    %c0_33 = arith.constant 0 : index
    %53 = vector.load %arg3[%c2_31, %c0_32, %c0_33] : memref<4x128x128xbf16, #tpu.memory_space<vmem>>, vector<1x128x128xbf16>
    %54 = vector.shape_cast %53 : vector<1x128x128xbf16> to vector<128x128xbf16>
    %cst_34 = arith.constant dense<0.000000e+00> : vector<16x128xf32>
    %55 = tpu.matmul %52, %54, %cst_34 {dimension_numbers = #tpu.dot_dimension_numbers<[1], [0], [0], [1], [0, 0, 1, 1], [], []>} : vector<16x128xbf16>, vector<128x128xbf16>, vector<16x128xf32> -> vector<16x128xf32>
    %56 = vector.broadcast %11 : vector<1x128xf32> to vector<16x128xf32>
    %57 = arith.addf %55, %56 : vector<16x128xf32>
    %cst_35 = arith.constant 0.000000e+00 : f32
    %58 = vector.broadcast %cst_35 : f32 to vector<16x128xf32>
    %59 = arith.maximumf %57, %58 : vector<16x128xf32>
    %60 = arith.truncf %59 : vector<16x128xf32> to vector<16x128xbf16>
    %c3_36 = arith.constant 3 : index
    %c0_37 = arith.constant 0 : index
    %c0_38 = arith.constant 0 : index
    %61 = vector.load %arg3[%c3_36, %c0_37, %c0_38] : memref<4x128x128xbf16, #tpu.memory_space<vmem>>, vector<1x128x128xbf16>
    %62 = vector.shape_cast %61 : vector<1x128x128xbf16> to vector<128x128xbf16>
    %cst_39 = arith.constant dense<0.000000e+00> : vector<16x128xf32>
    %63 = tpu.matmul %60, %62, %cst_39 {dimension_numbers = #tpu.dot_dimension_numbers<[1], [0], [0], [1], [0, 0, 1, 1], [], []>} : vector<16x128xbf16>, vector<128x128xbf16>, vector<16x128xf32> -> vector<16x128xf32>
    %64 = vector.broadcast %12 : vector<1x128xf32> to vector<16x128xf32>
    %65 = arith.addf %63, %64 : vector<16x128xf32>
    %cst_40 = arith.constant dense<0xFF800000> : vector<16xf32>
    %66 = vector.multi_reduction <maximumf>, %65, %cst_40 [1] : vector<16x128xf32> to vector<16xf32>
    %67 = vector.shape_cast %66 : vector<16xf32> to vector<16x1xf32>
    %68 = vector.broadcast %67 : vector<16x1xf32> to vector<16x128xf32>
    %69 = arith.subf %65, %68 : vector<16x128xf32>
    %70 = math.exp %69 : vector<16x128xf32>
    %cst_41 = arith.constant dense<0.000000e+00> : vector<16xf32>
    %71 = vector.multi_reduction <add>, %70, %cst_41 [1] : vector<16x128xf32> to vector<16xf32>
    %72 = vector.shape_cast %71 : vector<16xf32> to vector<16x1xf32>
    %73 = tpu.reciprocal %72 {approx = true} : vector<16x1xf32> -> vector<16x1xf32>
    %74 = vector.broadcast %73 : vector<16x1xf32> to vector<16x128xf32>
    %75 = arith.mulf %70, %74 : vector<16x128xf32>
    %c0_42 = arith.constant 0 : index
    %c0_43 = arith.constant 0 : index
    %76 = vector.load %arg4[%c0_42, %c0_43] : memref<16x128xf32, #tpu.memory_space<vmem>>, vector<16x128xf32>
    tpu.vector_store %arg4[%c0_42, %c0_43], %75 {strides = array<i32>} : memref<16x128xf32, #tpu.memory_space<vmem>>, vector<16x128xf32>,
    return
  }
  func.func @transform_0(%arg0: i32) -> (i32, i32, i32) {
    %c0_i32 = arith.constant 0 : i32
    %c0_i32_0 = arith.constant 0 : i32
    %c0_i32_1 = arith.constant 0 : i32
    return %c0_i32, %arg0, %c0_i32_0 : i32, i32, i32
  }
  func.func @transform_1(%arg0: i32) -> (i32, i32) {
    %c0_i32 = arith.constant 0 : i32
    %c0_i32_0 = arith.constant 0 : i32
    %c0_i32_1 = arith.constant 0 : i32
    return %c0_i32, %c0_i32_0 : i32, i32
  }
  func.func @transform_2(%arg0: i32) -> (i32, i32, i32) {
    %c0_i32 = arith.constant 0 : i32
    %c0_i32_0 = arith.constant 0 : i32
    %c0_i32_1 = arith.constant 0 : i32
    %c0_i32_2 = arith.constant 0 : i32
    return %c0_i32, %c0_i32_0, %c0_i32_1 : i32, i32, i32
  }
  func.func @transform_3(%arg0: i32) -> (i32, i32) {
    %c0_i32 = arith.constant 0 : i32
    %c0_i32_0 = arith.constant 0 : i32
    return %arg0, %c0_i32 : i32, i32
  }
}

</mosaic_0001>

<llo_original>
// kernel: tpu_custom_call.1
$region0: #{tpu_custom_call.1}
  #allocation0 [shape = 'u32[]', space=smem, size = 0x4, offset = 0x4, fixed_abs, tag = 'smem constant byte address 0x4 - core index']
  #allocation1 [shape = 'u32[72,128]{1,0:T(1,128)}', space=vmem, size = 0x9000, scoped, tag = 'internal scratch']
  %s0 = inlined_call_operand.hbm [shape: f32[4,16,128], index: 0, kind: input, shape index: {}]
  %s1 = inlined_call_operand.hbm [shape: f32[8,128], index: 1, kind: input, shape index: {}]
  %s2 = inlined_call_operand.hbm [shape: bf16[4,128,128], index: 2, kind: input, shape index: {}]
  %s3 = inlined_call_operand.hbm [shape: f32[16,128], index: 3, kind: output, shape index: {}]
  %s4 = sld [smem:[#allocation0]]
  $region34: #{tpu_custom_call.1} parent=0
    _
  %s6 = ssub.s32 1, %s4
  %s7 = scalar_select 0, %s6, %s4
  $region1: #{tpu_custom_call.1} parent=0
    #allocation2 [shape = 'u8[32768]{0}', space=vmem, size = 0x8000, scoped, tag = 'input window, operand 0, single buffered']
    #allocation3 [shape = 's32[1]{0}', space=sflag, size = 0x4, scoped, tag = 'scoped memory for tpu_custom_call.1']
    #allocation4 [shape = 's32[1]{0}', space=sflag, size = 0x4, scoped, tag = 'scoped memory for tpu_custom_call.1']
    #allocation5 [shape = 'u8[4096]{0}', space=vmem, size = 0x1000, scoped, tag = 'input window, operand 1, single buffered']
    #allocation6 [shape = 's32[1]{0}', space=sflag, size = 0x4, scoped, tag = 'scoped memory for tpu_custom_call.1']
    #allocation7 [shape = 'u8[131072]{0}', space=vmem, size = 0x20000, scoped, tag = 'input window, operand 2, single buffered']
    #allocation8 [shape = 'u8[8192]{0}', space=vmem, size = 0x2000, scoped, tag = 'output window, operand 0, single buffered']
    %8 = vsyncpa [#allocation3], 0
    %9 = vsyncpa [#allocation6], 0
    %10 = vsyncpa [#allocation4], 0
    // Predicated region
    $region2: #{tpu_custom_call.1} parent=1 // pred_check
      _
    $region3: #{tpu_custom_call.1} parent=1 // pred_check_branch
      %12 = sbr.rel (0) target = $region5
    $region4: #{tpu_custom_call.1} parent=1 // pred_region
      %14 = vsyncadd [#allocation3], 0
      %s15 = sshll.u32 %s0, 4
      %s16 = int_to_ptr.hbm [resolvable:$true] %s15
      %s17 = sshll.u32 [#allocation2], 4
      %s18 = int_to_ptr.vmem [resolvable:$true] %s17
      %23 = dma.hbm_to_vmem [thread:$0]  %s16, 1024, %s18, [#allocation3], 128, 128, 8
    $region5: #{tpu_custom_call.1} parent=1 // pred_fallthru
      _
    // Predicated region
    $region6: #{tpu_custom_call.1} parent=1 // pred_check
      _
    $region7: #{tpu_custom_call.1} parent=1 // pred_check_branch
      %25 = sbr.rel (0) target = $region9
    $region8: #{tpu_custom_call.1} parent=1 // pred_region
      %27 = vsyncadd [#allocation6], 0
      %s29 = sshll.u32 %s1, 4
      %s30 = int_to_ptr.hbm [resolvable:$true] %s29
      %s31 = sshll.u32 [#allocation5], 4
      %s32 = int_to_ptr.vmem [resolvable:$true] %s31
      %34 = dma.hbm_to_vmem [thread:$0]  %s30, 128, %s32, [#allocation6]
    $region9: #{tpu_custom_call.1} parent=1 // pred_fallthru
      _
    // Predicated region
    $region10: #{tpu_custom_call.1} parent=1 // pred_check
      _
    $region11: #{tpu_custom_call.1} parent=1 // pred_check_branch
      %36 = sbr.rel (0) target = $region13
    $region12: #{tpu_custom_call.1} parent=1 // pred_region
      %38 = vsyncadd [#allocation6], 0
      %s39 = sshll.u32 %s2, 4
      %s40 = int_to_ptr.hbm [resolvable:$true] %s39
      %s41 = sshll.u32 [#allocation7], 4
      %s42 = int_to_ptr.vmem [resolvable:$true] %s41
      %47 = dma.hbm_to_vmem [thread:$0]  %s40, 4096, %s42, [#allocation6], 64, 64, 4
    $region13: #{tpu_custom_call.1} parent=1 // pred_fallthru
      _
    // Predicated region
    $region14: #{tpu_custom_call.1} parent=1 // pred_check
      _
    $region15: #{tpu_custom_call.1} parent=1 // pred_check_branch
      %49 = sbr.rel (0) target = $region17
    $region16: #{tpu_custom_call.1} parent=1 // pred_region
      %51 = dma.done [#allocation3], 1024
    $region17: #{tpu_custom_call.1} parent=1 // pred_fallthru
      _
    // Predicated region
    $region18: #{tpu_custom_call.1} parent=1 // pred_check
      _
    $region19: #{tpu_custom_call.1} parent=1 // pred_check_branch
      %53 = sbr.rel (0) target = $region21
    $region20: #{tpu_custom_call.1} parent=1 // pred_region
      %55 = dma.done [#allocation6], 128
    $region21: #{tpu_custom_call.1} parent=1 // pred_fallthru
      _
    // Predicated region
    $region22: #{tpu_custom_call.1} parent=1 // pred_check
      _
    $region23: #{tpu_custom_call.1} parent=1 // pred_check_branch
      %57 = sbr.rel (0) target = $region25
    $region24: #{tpu_custom_call.1} parent=1 // pred_region
      %59 = dma.done [#allocation6], 4096
    $region25: #{tpu_custom_call.1} parent=1 // pred_fallthru
      _
    %v60 = vld [vmem:[#allocation2] sm:$0xff]
    %v61 = vld [vmem:[#allocation2 + $0x8] sm:$0xff]
    %s62 = scalar_lea.vmem [#allocation2], 16
    %v63 = vld [vmem:[%s62] sm:$0xff]
    %v64 = vld [vmem:[%s62 + $0x8] sm:$0xff]
    %s65 = scalar_lea.vmem [#allocation2], 32
    %v66 = vld [vmem:[%s65] sm:$0xff]
    %v67 = vld [vmem:[%s65 + $0x8] sm:$0xff]
    %s68 = scalar_lea.vmem [#allocation2], 48
    %v69 = vld [vmem:[%s68] sm:$0xff]
    %v70 = vld [vmem:[%s68 + $0x8] sm:$0xff]
    %v71 = vld [vmem:[#allocation5] sm:$0x1]
    %v72 = vld [vmem:[#allocation5 + $0x1] sm:$0x1]
    %v73 = vld [vmem:[#allocation5 + $0x2] sm:$0x1]
    %v74 = vld [vmem:[#allocation5 + $0x3] sm:$0x1]
    %v75 = vld [vmem:[#allocation5 + $0x4] sm:$0x1]
    %v76 = vld [vmem:[#allocation5 + $0x5] sm:$0x1]
    %v77 = vmul.f32 %v60, %v63
    %v78 = vmul.f32 %v61, %v64
    %v79 = vpack.c.bf16 %v78, %v77
    %v80 = vld [vmem:[#allocation7] sm:$0xf]
    %v81 = vld [vmem:[#allocation7 + $0x4] sm:$0xf]
    %v82 = vld [vmem:[#allocation7 + $0x8] sm:$0xf]
    %v83 = vld [vmem:[#allocation7 + $0xc] sm:$0xf]
    %v84 = vld [vmem:[#allocation7 + $0x10] sm:$0xf]
    %v85 = vld [vmem:[#allocation7 + $0x14] sm:$0xf]
    %v86 = vld [vmem:[#allocation7 + $0x18] sm:$0xf]
    %v87 = vld [vmem:[#allocation7 + $0x1c] sm:$0xf]
    %v88 = vld [vmem:[#allocation7 + $0x20] sm:$0xf]
    %v89 = vld [vmem:[#allocation7 + $0x24] sm:$0xf]
    %v90 = vld [vmem:[#allocation7 + $0x28] sm:$0xf]
    %v91 = vld [vmem:[#allocation7 + $0x2c] sm:$0xf]
    %v92 = vld [vmem:[#allocation7 + $0x30] sm:$0xf]
    %v93 = vld [vmem:[#allocation7 + $0x34] sm:$0xf]
    %v94 = vld [vmem:[#allocation7 + $0x38] sm:$0xf]
    %v95 = vld [vmem:[#allocation7 + $0x3c] sm:$0xf]
    %v112 = vunpack.c.l.b16 %v80
    %v113 = vunpack.c.l.b16 %v81
    %v114 = vunpack.c.l.b16 %v82
    %v115 = vunpack.c.l.b16 %v83
    %v116 = vunpack.c.l.b16 %v84
    %v117 = vunpack.c.l.b16 %v85
    %v118 = vunpack.c.l.b16 %v86
    %v119 = vunpack.c.l.b16 %v87
    %v120 = vunpack.c.l.b16 %v88
    %v121 = vunpack.c.l.b16 %v89
    %v122 = vunpack.c.l.b16 %v90
    %v123 = vunpack.c.l.b16 %v91
    %v124 = vunpack.c.l.b16 %v92
    %v125 = vunpack.c.l.b16 %v93
    %v126 = vunpack.c.l.b16 %v94
    %v127 = vunpack.c.l.b16 %v95
    %v128 = vpack.c.b16 %v113, %v112
    %v129 = vpack.c.b16 %v115, %v114
    %v130 = vpack.c.b16 %v117, %v116
    %v131 = vpack.c.b16 %v119, %v118
    %v132 = vpack.c.b16 %v121, %v120
    %v133 = vpack.c.b16 %v123, %v122
    %v134 = vpack.c.b16 %v125, %v124
    %v135 = vpack.c.b16 %v127, %v126
    %144 = vmatpush.bf16.msra.mxu0 %v135
    %145 = vmatpush.bf16.msra.mxu0 %v134
    %146 = vmatpush.bf16.msra.mxu0 %v133
    %147 = vmatpush.bf16.msra.mxu0 %v132
    %148 = vmatpush.bf16.msra.mxu0 %v131
    %149 = vmatpush.bf16.msra.mxu0 %v130
    %150 = vmatpush.bf16.msra.mxu0 %v129
    %151 = vmatpush.bf16.msra.mxu0 %v128
    %152 = vmatmul.bf16.gmra.mxu0 %v79
    %v153 = vpop.f32.mrf.mxu0
    %v154 = vadd.f32 %v66, %v153
    %v155 = vpop.f32.mrf.mxu0
    %v156 = vadd.f32 %v67, %v155
    %157 = vdwg.mxu0
    %v158 = vtanh.pop %v154
    %v159 = vtanh.pop %v156
    %v160 = vadd.f32 %v158, %v69
    %v161 = vadd.f32 %v159, %v70
    %162 = vadd.xlane.f32.xlu0 %v160
    %v163 = vpop.xlane.xlu0 %162
    %164 = vadd.xlane.f32.xlu0 %v161
    %v165 = vpop.xlane.xlu0 %164
    %v166 = vmul.f32 %v163, 0.010416667
    %v167 = vmul.f32 %v165, 0.010416667
    %v168 = vsub.f32 %v160, %v166
    %v169 = vsub.f32 %v161, %v167
    %v170 = vperm.slane %v76, 0
    %v171 = vmul.f32 %v168, %v170
    %v172 = vmul.f32 %v169, %v170
    %v173 = vmul.f32 %v171, %v171
    %v174 = vmul.f32 %v172, %v172
    %175 = vadd.xlane.f32.xlu0 %v173
    %v176 = vpop.xlane.xlu0 %175
    %177 = vadd.xlane.f32.xlu0 %v174
    %v178 = vpop.xlane.xlu0 %177
    %v179 = vmul.f32 %v176, 0.010416667
    %v180 = vmul.f32 %v178, 0.010416667
    %v181 = vadd.f32 %v179, 1e-05
    %v182 = vadd.f32 %v180, 1e-05
    %v183 = vrsqrt.pop %v181
    %v184 = vmul.f32 %v183, %v181
    %v185 = vmul.f32 %v184, %v183
    %v186 = vmul.f32 0.5, %v185
    %v187 = vsub.f32 1.5, %v186
    %v188 = vmul.f32 %v183, %v187
    %vm189 = vweird.f32 %v181
    %vm190 = vweird.f32 %v183
    %vm191 = vmor %vm189, %vm190
    %v192 = vsel %vm191, %v183, %v188
    %v193 = vrsqrt.pop %v182
    %v194 = vmul.f32 %v193, %v182
    %v195 = vmul.f32 %v194, %v193
    %v196 = vmul.f32 0.5, %v195
    %v197 = vsub.f32 1.5, %v196
    %v198 = vmul.f32 %v193, %v197
    %vm199 = vweird.f32 %v182
    %vm200 = vweird.f32 %v193
    %vm201 = vmor %vm199, %vm200
    %v202 = vsel %vm201, %v193, %v198
    %v203 = vmul.f32 %v171, %v192
    %v204 = vmul.f32 %v172, %v202
    %v205 = vperm.slane %v71, 0
    %v206 = vmul.f32 %v203, %v205
    %v207 = vmul.f32 %v204, %v205
    %v208 = vperm.slane %v72, 0
    %v209 = vadd.f32 %v206, %v208
    %v210 = vadd.f32 %v207, %v208
    %v211 = vpack.c.bf16 %v210, %v209
    %s212 = scalar_lea.vmem [#allocation7], 64
    %v213 = vld [vmem:[%s212] sm:$0xf]
    %v214 = vld [vmem:[%s212 + $0x4] sm:$0xf]
    %v215 = vld [vmem:[%s212 + $0x8] sm:$0xf]
    %v216 = vld [vmem:[%s212 + $0xc] sm:$0xf]
    %v217 = vld [vmem:[%s212 + $0x10] sm:$0xf]
    %v218 = vld [vmem:[%s212 + $0x14] sm:$0xf]
    %v219 = vld [vmem:[%s212 + $0x18] sm:$0xf]
    %v220 = vld [vmem:[%s212 + $0x1c] sm:$0xf]
    %v221 = vld [vmem:[%s212 + $0x20] sm:$0xf]
    %v222 = vld [vmem:[%s212 + $0x24] sm:$0xf]
    %v223 = vld [vmem:[%s212 + $0x28] sm:$0xf]
    %v224 = vld [vmem:[%s212 + $0x2c] sm:$0xf]
    %v225 = vld [vmem:[%s212 + $0x30] sm:$0xf]
    %v226 = vld [vmem:[%s212 + $0x34] sm:$0xf]
    %v227 = vld [vmem:[%s212 + $0x38] sm:$0xf]
    %v228 = vld [vmem:[%s212 + $0x3c] sm:$0xf]
    %v229 = vperm.slane %v73, 0
    %v246 = vunpack.c.l.b16 %v213
    %v247 = vunpack.c.l.b16 %v214
    %v248 = vunpack.c.l.b16 %v215
    %v249 = vunpack.c.l.b16 %v216
    %v250 = vunpack.c.l.b16 %v217
    %v251 = vunpack.c.l.b16 %v218
    %v252 = vunpack.c.l.b16 %v219
    %v253 = vunpack.c.l.b16 %v220
    %v254 = vunpack.c.l.b16 %v221
    %v255 = vunpack.c.l.b16 %v222
    %v256 = vunpack.c.l.b16 %v223
    %v257 = vunpack.c.l.b16 %v224
    %v258 = vunpack.c.l.b16 %v225
    %v259 = vunpack.c.l.b16 %v226
    %v260 = vunpack.c.l.b16 %v227
    %v261 = vunpack.c.l.b16 %v228
    %v262 = vpack.c.b16 %v247, %v246
    %v263 = vpack.c.b16 %v249, %v248
    %v264 = vpack.c.b16 %v251, %v250
    %v265 = vpack.c.b16 %v253, %v252
    %v266 = vpack.c.b16 %v255, %v254
    %v267 = vpack.c.b16 %v257, %v256
    %v268 = vpack.c.b16 %v259, %v258
    %v269 = vpack.c.b16 %v261, %v260
    %278 = vmatpush.bf16.msra.mxu0 %v269
    %279 = vmatpush.bf16.msra.mxu0 %v268
    %280 = vmatpush.bf16.msra.mxu0 %v267
    %281 = vmatpush.bf16.msra.mxu0 %v266
    %282 = vmatpush.bf16.msra.mxu0 %v265
    %283 = vmatpush.bf16.msra.mxu0 %v264
    %284 = vmatpush.bf16.msra.mxu0 %v263
    %285 = vmatpush.bf16.msra.mxu0 %v262
    %286 = vmatmul.bf16.gmra.mxu0 %v211
    %v287 = vpop.f32.mrf.mxu0
    %v288 = vadd.f32 %v229, %v287
    %v289 = vpop.f32.mrf.mxu0
    %v290 = vadd.f32 %v229, %v289
    %291 = vdwg.mxu0
    %v292 = vmax.f32 %v288, 0.0
    %v293 = vmax.f32 %v290, 0.0
    %v294 = vpack.c.bf16 %v293, %v292
    %s295 = scalar_lea.vmem [#allocation7], 128
    %v296 = vld [vmem:[%s295] sm:$0xf]
    %v297 = vld [vmem:[%s295 + $0x4] sm:$0xf]
    %v298 = vld [vmem:[%s295 + $0x8] sm:$0xf]
    %v299 = vld [vmem:[%s295 + $0xc] sm:$0xf]
    %v300 = vld [vmem:[%s295 + $0x10] sm:$0xf]
    %v301 = vld [vmem:[%s295 + $0x14] sm:$0xf]
    %v302 = vld [vmem:[%s295 + $0x18] sm:$0xf]
    %v303 = vld [vmem:[%s295 + $0x1c] sm:$0xf]
    %v304 = vld [vmem:[%s295 + $0x20] sm:$0xf]
    %v305 = vld [vmem:[%s295 + $0x24] sm:$0xf]
    %v306 = vld [vmem:[%s295 + $0x28] sm:$0xf]
    %v307 = vld [vmem:[%s295 + $0x2c] sm:$0xf]
    %v308 = vld [vmem:[%s295 + $0x30] sm:$0xf]
    %v309 = vld [vmem:[%s295 + $0x34] sm:$0xf]
    %v310 = vld [vmem:[%s295 + $0x38] sm:$0xf]
    %v311 = vld [vmem:[%s295 + $0x3c] sm:$0xf]
    %v312 = vperm.slane %v74, 0
    %v329 = vunpack.c.l.b16 %v296
    %v330 = vunpack.c.l.b16 %v297
    %v331 = vunpack.c.l.b16 %v298
    %v332 = vunpack.c.l.b16 %v299
    %v333 = vunpack.c.l.b16 %v300
    %v334 = vunpack.c.l.b16 %v301
    %v335 = vunpack.c.l.b16 %v302
    %v336 = vunpack.c.l.b16 %v303
    %v337 = vunpack.c.l.b16 %v304
    %v338 = vunpack.c.l.b16 %v305
    %v339 = vunpack.c.l.b16 %v306
    %v340 = vunpack.c.l.b16 %v307
    %v341 = vunpack.c.l.b16 %v308
    %v342 = vunpack.c.l.b16 %v309
    %v343 = vunpack.c.l.b16 %v310
    %v344 = vunpack.c.l.b16 %v311
    %v345 = vpack.c.b16 %v330, %v329
    %v346 = vpack.c.b16 %v332, %v331
    %v347 = vpack.c.b16 %v334, %v333
    %v348 = vpack.c.b16 %v336, %v335
    %v349 = vpack.c.b16 %v338, %v337
    %v350 = vpack.c.b16 %v340, %v339
    %v351 = vpack.c.b16 %v342, %v341
    %v352 = vpack.c.b16 %v344, %v343
    %361 = vmatpush.bf16.msra.mxu0 %v352
    %362 = vmatpush.bf16.msra.mxu0 %v351
    %363 = vmatpush.bf16.msra.mxu0 %v350
    %364 = vmatpush.bf16.msra.mxu0 %v349
    %365 = vmatpush.bf16.msra.mxu0 %v348
    %366 = vmatpush.bf16.msra.mxu0 %v347
    %367 = vmatpush.bf16.msra.mxu0 %v346
    %368 = vmatpush.bf16.msra.mxu0 %v345
    %369 = vmatmul.bf16.gmra.mxu0 %v294
    %v370 = vpop.f32.mrf.mxu0
    %v371 = vadd.f32 %v312, %v370
    %v372 = vpop.f32.mrf.mxu0
    %v373 = vadd.f32 %v312, %v372
    %374 = vdwg.mxu0
    %v375 = vmax.f32 %v371, 0.0
    %v376 = vmax.f32 %v373, 0.0
    %v377 = vpack.c.bf16 %v376, %v375
    %s378 = scalar_lea.vmem [#allocation7], 192
    %v379 = vld [vmem:[%s378] sm:$0xf]
    %v380 = vld [vmem:[%s378 + $0x4] sm:$0xf]
    %v381 = vld [vmem:[%s378 + $0x8] sm:$0xf]
    %v382 = vld [vmem:[%s378 + $0xc] sm:$0xf]
    %v383 = vld [vmem:[%s378 + $0x10] sm:$0xf]
    %v384 = vld [vmem:[%s378 + $0x14] sm:$0xf]
    %v385 = vld [vmem:[%s378 + $0x18] sm:$0xf]
    %v386 = vld [vmem:[%s378 + $0x1c] sm:$0xf]
    %v387 = vld [vmem:[%s378 + $0x20] sm:$0xf]
    %v388 = vld [vmem:[%s378 + $0x24] sm:$0xf]
    %v389 = vld [vmem:[%s378 + $0x28] sm:$0xf]
    %v390 = vld [vmem:[%s378 + $0x2c] sm:$0xf]
    %v391 = vld [vmem:[%s378 + $0x30] sm:$0xf]
    %v392 = vld [vmem:[%s378 + $0x34] sm:$0xf]
    %v393 = vld [vmem:[%s378 + $0x38] sm:$0xf]
    %v394 = vld [vmem:[%s378 + $0x3c] sm:$0xf]
    %v395 = vperm.slane %v75, 0
    %v412 = vunpack.c.l.b16 %v379
    %v413 = vunpack.c.l.b16 %v380
    %v414 = vunpack.c.l.b16 %v381
    %v415 = vunpack.c.l.b16 %v382
    %v416 = vunpack.c.l.b16 %v383
    %v417 = vunpack.c.l.b16 %v384
    %v418 = vunpack.c.l.b16 %v385
    %v419 = vunpack.c.l.b16 %v386
    %v420 = vunpack.c.l.b16 %v387
    %v421 = vunpack.c.l.b16 %v388
    %v422 = vunpack.c.l.b16 %v389
    %v423 = vunpack.c.l.b16 %v390
    %v424 = vunpack.c.l.b16 %v391
    %v425 = vunpack.c.l.b16 %v392
    %v426 = vunpack.c.l.b16 %v393
    %v427 = vunpack.c.l.b16 %v394
    %v428 = vpack.c.b16 %v413, %v412
    %v429 = vpack.c.b16 %v415, %v414
    %v430 = vpack.c.b16 %v417, %v416
    %v431 = vpack.c.b16 %v419, %v418
    %v432 = vpack.c.b16 %v421, %v420
    %v433 = vpack.c.b16 %v423, %v422
    %v434 = vpack.c.b16 %v425, %v424
    %v435 = vpack.c.b16 %v427, %v426
    %444 = vmatpush.bf16.msra.mxu0 %v435
    %445 = vmatpush.bf16.msra.mxu0 %v434
    %446 = vmatpush.bf16.msra.mxu0 %v433
    %447 = vmatpush.bf16.msra.mxu0 %v432
    %448 = vmatpush.bf16.msra.mxu0 %v431
    %449 = vmatpush.bf16.msra.mxu0 %v430
    %450 = vmatpush.bf16.msra.mxu0 %v429
    %451 = vmatpush.bf16.msra.mxu0 %v428
    %452 = vmatmul.bf16.gmra.mxu0 %v377
    %v453 = vpop.f32.mrf.mxu0
    %v454 = vadd.f32 %v395, %v453
    %v455 = vpop.f32.mrf.mxu0
    %v456 = vadd.f32 %v395, %v455
    %457 = vdwg.mxu0
    %458 = vmax.xlane.f32.xlu0 %v454
    %v459 = vpop.xlane.xlu0 %458
    %460 = vmax.xlane.f32.xlu0 %v456
    %v461 = vpop.xlane.xlu0 %460
    %v462 = vsub.f32 %v454, %v459
    %v463 = vsub.f32 %v456, %v461
    %v464 = vmul.f32 %v462, 1.442695
    %v465 = vpow.pop %v464
    %v466 = vmul.f32 %v463, 1.442695
    %v467 = vpow.pop %v466
    %468 = vadd.xlane.f32.xlu0 %v465
    %v469 = vpop.xlane.xlu0 %468
    %470 = vadd.xlane.f32.xlu0 %v467
    %v471 = vpop.xlane.xlu0 %470
    %v472 = vrcp.pop %v469
    %v473 = vrcp.pop %v471
    %v474 = vmul.f32 %v465, %v472
    %v475 = vmul.f32 %v467, %v473
    %476 = vst [vmem:[#allocation8] sm:$0xff] %v474
    %477 = vst [vmem:[#allocation8 + $0x8] sm:$0xff] %v475
    // Predicated region
    $region26: #{tpu_custom_call.1} parent=1 // pred_check
      _
    $region27: #{tpu_custom_call.1} parent=1 // pred_check_branch
      %479 = sbr.rel (0) target = $region29
    $region28: #{tpu_custom_call.1} parent=1 // pred_region
      %481 = vsyncadd [#allocation4], 0
      %s482 = sshll.u32 [#allocation8], 4
      %s483 = int_to_ptr.vmem [resolvable:$true] %s482
      %s484 = sshll.u32 %s3, 4
      %s485 = int_to_ptr.hbm [resolvable:$true] %s484
      %490 = dma.vmem_to_hbm [thread:$0]  %s483, 256, %s485, [#allocation4], 128, 128, 8
    $region29: #{tpu_custom_call.1} parent=1 // pred_fallthru
      _
    // Predicated region
    $region30: #{tpu_custom_call.1} parent=1 // pred_check
      _
    $region31: #{tpu_custom_call.1} parent=1 // pred_check_branch
      %492 = sbr.rel (0) target = $region33
    $region32: #{tpu_custom_call.1} parent=1 // pred_region
      %494 = dma.done [#allocation4], 256
    $region33: #{tpu_custom_call.1} parent=1 // pred_fallthru
      _
    %495 = vsyncpa [#allocation3], 1
    %496 = vsyncpa [#allocation6], 1
    %497 = vsyncpa [#allocation4], 1

</llo_original>
